<compile_context>
chip_gen: v5e
topology: v5e:2x2
jax: 0.10.0
libtpu: 0.0.40
codegen_flags: <defaults>
</compile_context>

<pallas_src>
import math

import jax
import jax.numpy as jnp
from jax import lax
from jax.experimental import pallas as pl
from jax.experimental.pallas import tpu as pltpu


# -----------------------------------------------------------------------------
# Fused self-attention MHA kernel: one batch element per grid step.
# -----------------------------------------------------------------------------
def _make_fused_mha_kernel(head: int, d_model: int):
    d_k = d_model // head
    inv_sqrt_dk = 1.0 / math.sqrt(d_k)

    def kernel(x_ref, wqkv_ref, bqkv_ref, wo_ref, bo_ref, o_ref):
        x = x_ref[0]                       # (S, d_model)
        w_qkv = wqkv_ref[...]              # (3*d_model, d_model)   PyTorch (N, K) layout
        b_qkv = bqkv_ref[...]              # (1, 3*d_model)
        w_o = wo_ref[...]                  # (d_model, d_model)
        b_o = bo_ref[...]                  # (1, d_model)

        s_len = x.shape[0]

        # Fused Q/K/V projection: one (S, d_model) x (d_model, 3*d_model) matmul,
        # contracting on the weight's axis 1 directly (== x @ w_qkv.T), f32 accumulate.
        qkv = lax.dot_general(
            x, w_qkv,
            dimension_numbers=(((1,), (1,)), ((), ())),
            preferred_element_type=jnp.float32) + b_qkv.astype(jnp.float32)

        # Output-projection accumulator, initialized with the output bias (hoisted
        # broadcast — not inside the head loop).
        acc = jnp.broadcast_to(b_o.astype(jnp.float32), (s_len, d_model))

        for h in range(head):              # static unroll over heads
            lo = h * d_k
            qh = qkv[:, lo:lo + d_k]                                    # (S, d_k)
            kh = qkv[:, d_model + lo:d_model + lo + d_k]                # (S, d_k)
            vh = qkv[:, 2 * d_model + lo:2 * d_model + lo + d_k]        # (S, d_k)

            # scores = qh @ kh.T  (contract last dims; no materialized transpose)
            scores = lax.dot_general(
                qh, kh,
                dimension_numbers=(((1,), (1,)), ((), ())),
                preferred_element_type=jnp.float32) * inv_sqrt_dk       # (S, S)

            m = jnp.max(scores, axis=-1, keepdims=True)
            e = jnp.exp(scores - m)
            p = e / jnp.sum(e, axis=-1, keepdims=True)                  # exact softmax

            oh = jnp.dot(p, vh, preferred_element_type=jnp.float32)     # (S, d_k)

            # Head h's slice of the output projection: oh @ w_o[:, lo:lo+d_k].T.
            # Accumulating per head avoids ever materializing the (S, head*d_k) concat.
            acc = acc + lax.dot_general(
                oh, w_o[:, lo:lo + d_k],
                dimension_numbers=(((1,), (1,)), ((), ())),
                preferred_element_type=jnp.float32)                     # (S, d_model)

        o_ref[0] = acc.astype(o_ref.dtype)                              # single store

    return kernel


def _const_spec(shape):
    # Full-array block, constant index_map -> resident in VMEM, not re-fetched per step.
    return pl.BlockSpec(shape, lambda b: (0, 0))


def mha_self_attention_forward(params, x, head):
    """Self-attention MultiHeadAttention forward (as used by STL2G: attn(x, x, x, None)).

    x: (B, S, d_model) -> (B, S, d_model)
    """
    B, S, d_model = x.shape
    d_k = d_model // head

    w_qkv = params["w_qkv"]                               # (3*d_model, d_model)
    b_qkv = params["b_qkv"].reshape(1, 3 * d_model)
    w_o = params["wo"]                                    # (d_model, d_model)
    b_o = params["bo"].reshape(1, d_model)

    itemsize = jnp.dtype(x.dtype).itemsize
    cost = pl.CostEstimate(
        flops=(2 * B * S * d_model * 3 * d_model          # fused QKV projection
               + B * head * 4 * S * S * d_k               # scores + PV
               + 2 * B * S * d_model * d_model),          # output projection
        transcendentals=B * head * S * S,
        bytes_accessed=(2 * B * S * d_model
                        + 4 * d_model * d_model + 4 * d_model) * itemsize)

    act_spec = pl.BlockSpec((1, S, d_model), lambda b: (b, 0, 0))

    return pl.pallas_call(
        _make_fused_mha_kernel(head, d_model),
        out_shape=jax.ShapeDtypeStruct((B, S, d_model), x.dtype),
        grid_spec=pltpu.PrefetchScalarGridSpec(
            num_scalar_prefetch=0,
            grid=(B,),
            in_specs=[
                act_spec,
                _const_spec(w_qkv.shape),
                _const_spec(b_qkv.shape),
                _const_spec(w_o.shape),
                _const_spec(b_o.shape),
            ],
            out_specs=act_spec,
        ),
        compiler_params=pltpu.CompilerParams(
            dimension_semantics=("parallel",)),           # B >= 2 keeps both v7x TCs busy
        cost_estimate=cost,
    )(x, w_qkv, b_qkv, w_o, b_o)


def multi_head_attention(params, query, key, value, head, mask=None):
    """Forward matching MultiHeadAttention.forward; STL2G always calls it as
    attn(x, x, x, None) (self-attention, no mask)."""
    assert mask is None, "mask path not implemented (STL2G always passes mask=None)"
    assert (query is key) and (key is value), \
        "cross-attention (distinct q/k/v inputs) not implemented; STL2G is self-attention only"
    return mha_self_attention_forward(params, query, head)


# -----------------------------------------------------------------------------
# Pure-JAX reference for a correctness check (mirrors the PyTorch module exactly)
# -----------------------------------------------------------------------------
def reference_mha(params, query, key, value, head):
    B, S, d_model = query.shape
    d_k = d_model // head

    def lin(x, w, b):
        return x @ w.T + b

    def proj(x, w, b):
        return lin(x, w, b).reshape(B, S, head, d_k).transpose(0, 2, 1, 3)

    q = proj(query, params["wq"], params["bq"])
    k = proj(key, params["wk"], params["bk"])
    v = proj(value, params["wv"], params["bv"])
    scores = jnp.einsum("bhqd,bhkd->bhqk", q, k) / math.sqrt(d_k)
    p = jax.nn.softmax(scores, axis=-1)
    x = jnp.einsum("bhqk,bhkd->bhqd", p, v)
    x = x.transpose(0, 2, 1, 3).reshape(B, S, head * d_k)
    return lin(x, params["wo"], params["bo"])


# -----------------------------------------------------------------------------
# Main
# -----------------------------------------------------------------------------
if __name__ == "__main__":
    B, S, d_model, head = 2, 8, 32, 4

    key0 = jax.random.PRNGKey(0)
    keys = jax.random.split(key0, 9)
    scale = 1.0 / math.sqrt(d_model)

    wq = jax.random.normal(keys[0], (d_model, d_model), jnp.float32) * scale
    bq = jax.random.normal(keys[1], (d_model,), jnp.float32) * scale
    wk = jax.random.normal(keys[2], (d_model, d_model), jnp.float32) * scale
    bk = jax.random.normal(keys[3], (d_model,), jnp.float32) * scale
    wv = jax.random.normal(keys[4], (d_model, d_model), jnp.float32) * scale
    bv = jax.random.normal(keys[5], (d_model,), jnp.float32) * scale
    wo = jax.random.normal(keys[6], (d_model, d_model), jnp.float32) * scale
    bo = jax.random.normal(keys[7], (d_model,), jnp.float32) * scale

    params = {
        "wq": wq, "bq": bq, "wk": wk, "bk": bk, "wv": wv, "bv": bv,
        "wo": wo, "bo": bo,
        # Fused QKV weight/bias, built ONCE at parameter-setup time (not per forward).
        "w_qkv": jnp.concatenate([wq, wk, wv], axis=0),
        "b_qkv": jnp.concatenate([bq, bk, bv], axis=0),
    }

    # Self-attention, exactly as STL2G's EncoderLayer uses it: attn(x, x, x, None).
    x = jax.random.normal(keys[8], (B, S, d_model), jnp.float32)

    out = multi_head_attention(params, x, x, x, head, mask=None)
    out = jax.block_until_ready(out)

    ref = reference_mha(params, x, x, x, head)
    err = float(jnp.max(jnp.abs(out - ref)))
    assert out.shape == (B, S, d_model)
    assert err < 1e-4, f"mismatch vs reference: {err}"

    print("KERNEL_OK")
</pallas_src>

<mosaic_0001>
module attributes {stable_mosaic.version = 11 : i64} {
  func.func @kernel(%arg0: i32, %arg1: memref<1x8x32xf32, #tpu.memory_space<vmem>>, %arg2: memref<96x32xf32, #tpu.memory_space<vmem>>, %arg3: memref<1x96xf32, #tpu.memory_space<vmem>>, %arg4: memref<32x32xf32, #tpu.memory_space<vmem>>, %arg5: memref<1x32xf32, #tpu.memory_space<vmem>>, %arg6: memref<1x8x32xf32, #tpu.memory_space<vmem>>) attributes {dimension_semantics = [#tpu.dimension_semantics<parallel>], iteration_bounds = array<i64: 2>, scalar_prefetch = 0 : i64, scratch_operands = 0 : i64, tpu.core_type = #tpu.core_type<tc>, window_params = [{transform_indices = @transform_0, window_bounds = array<i64: 1, 8, 32>}, {pipeline_mode = #tpu.pipeline_mode<synchronous>, transform_indices = @transform_1, window_bounds = array<i64: 96, 32>}, {pipeline_mode = #tpu.pipeline_mode<synchronous>, transform_indices = @transform_2, window_bounds = array<i64: 1, 96>}, {pipeline_mode = #tpu.pipeline_mode<synchronous>, transform_indices = @transform_3, window_bounds = array<i64: 32, 32>}, {pipeline_mode = #tpu.pipeline_mode<synchronous>, transform_indices = @transform_4, window_bounds = array<i64: 1, 32>}, {transform_indices = @transform_5, window_bounds = array<i64: 1, 8, 32>}]} {
    %c0 = arith.constant 0 : index
    %c0_0 = arith.constant 0 : index
    %c0_1 = arith.constant 0 : index
    %0 = vector.load %arg1[%c0, %c0_0, %c0_1] : memref<1x8x32xf32, #tpu.memory_space<vmem>>, vector<1x8x32xf32>
    %1 = vector.shape_cast %0 : vector<1x8x32xf32> to vector<8x32xf32>
    %c0_2 = arith.constant 0 : index
    %c0_3 = arith.constant 0 : index
    %2 = vector.load %arg2[%c0_2, %c0_3] : memref<96x32xf32, #tpu.memory_space<vmem>>, vector<96x32xf32>
    %c0_4 = arith.constant 0 : index
    %c0_5 = arith.constant 0 : index
    %3 = vector.load %arg3[%c0_4, %c0_5] : memref<1x96xf32, #tpu.memory_space<vmem>>, vector<1x96xf32>
    %c0_6 = arith.constant 0 : index
    %c0_7 = arith.constant 0 : index
    %4 = vector.load %arg4[%c0_6, %c0_7] : memref<32x32xf32, #tpu.memory_space<vmem>>, vector<32x32xf32>
    %c0_8 = arith.constant 0 : index
    %c0_9 = arith.constant 0 : index
    %5 = vector.load %arg5[%c0_8, %c0_9] : memref<1x32xf32, #tpu.memory_space<vmem>>, vector<1x32xf32>
    %cst = arith.constant dense<0.000000e+00> : vector<8x96xf32>
    %6 = tpu.matmul %1, %2, %cst {dimension_numbers = #tpu.dot_dimension_numbers<[1], [1], [0], [0], [0, 0, 1, 0], [], []>} : vector<8x32xf32>, vector<96x32xf32>, vector<8x96xf32> -> vector<8x96xf32>
    %7 = vector.broadcast %3 : vector<1x96xf32> to vector<8x96xf32>
    %8 = arith.addf %6, %7 : vector<8x96xf32>
    %9 = vector.shape_cast %5 : vector<1x32xf32> to vector<1x32xf32>
    %10 = vector.broadcast %9 : vector<1x32xf32> to vector<8x32xf32>
    %11 = vector.extract_strided_slice %8 {offsets = [0, 0], sizes = [8, 8], strides = [1, 1]} : vector<8x96xf32> to vector<8x8xf32>
    %12 = vector.extract_strided_slice %8 {offsets = [0, 32], sizes = [8, 8], strides = [1, 1]} : vector<8x96xf32> to vector<8x8xf32>
    %13 = vector.extract_strided_slice %8 {offsets = [0, 64], sizes = [8, 8], strides = [1, 1]} : vector<8x96xf32> to vector<8x8xf32>
    %cst_10 = arith.constant dense<0.000000e+00> : vector<8x8xf32>
    %14 = tpu.matmul %11, %12, %cst_10 {dimension_numbers = #tpu.dot_dimension_numbers<[1], [1], [0], [0], [0, 0, 1, 0], [], []>} : vector<8x8xf32>, vector<8x8xf32>, vector<8x8xf32> -> vector<8x8xf32>
    %cst_11 = arith.constant 0.353553385 : f32
    %15 = vector.broadcast %cst_11 : f32 to vector<8x8xf32>
    %16 = arith.mulf %14, %15 : vector<8x8xf32>
    %cst_12 = arith.constant dense<0xFF800000> : vector<8xf32>
    %17 = vector.multi_reduction <maximumf>, %16, %cst_12 [1] : vector<8x8xf32> to vector<8xf32>
    %18 = vector.shape_cast %17 : vector<8xf32> to vector<8x1xf32>
    %19 = vector.broadcast %18 : vector<8x1xf32> to vector<8x8xf32>
    %20 = arith.subf %16, %19 : vector<8x8xf32>
    %21 = math.exp %20 : vector<8x8xf32>
    %cst_13 = arith.constant dense<0.000000e+00> : vector<8xf32>
    %22 = vector.multi_reduction <add>, %21, %cst_13 [1] : vector<8x8xf32> to vector<8xf32>
    %23 = vector.shape_cast %22 : vector<8xf32> to vector<8x1xf32>
    %24 = vector.broadcast %23 : vector<8x1xf32> to vector<8x8xf32>
    %25 = arith.divf %21, %24 : vector<8x8xf32>
    %cst_14 = arith.constant dense<0.000000e+00> : vector<8x8xf32>
    %26 = tpu.matmul %25, %13, %cst_14 {dimension_numbers = #tpu.dot_dimension_numbers<[1], [0], [0], [1], [0, 0, 1, 1], [], []>} : vector<8x8xf32>, vector<8x8xf32>, vector<8x8xf32> -> vector<8x8xf32>
    %27 = vector.extract_strided_slice %4 {offsets = [0, 0], sizes = [32, 8], strides = [1, 1]} : vector<32x32xf32> to vector<32x8xf32>
    %cst_15 = arith.constant dense<0.000000e+00> : vector<8x32xf32>
    %28 = tpu.matmul %26, %27, %cst_15 {dimension_numbers = #tpu.dot_dimension_numbers<[1], [1], [0], [0], [0, 0, 1, 0], [], []>} : vector<8x8xf32>, vector<32x8xf32>, vector<8x32xf32> -> vector<8x32xf32>
    %29 = arith.addf %10, %28 : vector<8x32xf32>
    %30 = vector.extract_strided_slice %8 {offsets = [0, 8], sizes = [8, 8], strides = [1, 1]} : vector<8x96xf32> to vector<8x8xf32>
    %31 = vector.extract_strided_slice %8 {offsets = [0, 40], sizes = [8, 8], strides = [1, 1]} : vector<8x96xf32> to vector<8x8xf32>
    %32 = vector.extract_strided_slice %8 {offsets = [0, 72], sizes = [8, 8], strides = [1, 1]} : vector<8x96xf32> to vector<8x8xf32>
    %cst_16 = arith.constant dense<0.000000e+00> : vector<8x8xf32>
    %33 = tpu.matmul %30, %31, %cst_16 {dimension_numbers = #tpu.dot_dimension_numbers<[1], [1], [0], [0], [0, 0, 1, 0], [], []>} : vector<8x8xf32>, vector<8x8xf32>, vector<8x8xf32> -> vector<8x8xf32>
    %cst_17 = arith.constant 0.353553385 : f32
    %34 = vector.broadcast %cst_17 : f32 to vector<8x8xf32>
    %35 = arith.mulf %33, %34 : vector<8x8xf32>
    %cst_18 = arith.constant dense<0xFF800000> : vector<8xf32>
    %36 = vector.multi_reduction <maximumf>, %35, %cst_18 [1] : vector<8x8xf32> to vector<8xf32>
    %37 = vector.shape_cast %36 : vector<8xf32> to vector<8x1xf32>
    %38 = vector.broadcast %37 : vector<8x1xf32> to vector<8x8xf32>
    %39 = arith.subf %35, %38 : vector<8x8xf32>
    %40 = math.exp %39 : vector<8x8xf32>
    %cst_19 = arith.constant dense<0.000000e+00> : vector<8xf32>
    %41 = vector.multi_reduction <add>, %40, %cst_19 [1] : vector<8x8xf32> to vector<8xf32>
    %42 = vector.shape_cast %41 : vector<8xf32> to vector<8x1xf32>
    %43 = vector.broadcast %42 : vector<8x1xf32> to vector<8x8xf32>
    %44 = arith.divf %40, %43 : vector<8x8xf32>
    %cst_20 = arith.constant dense<0.000000e+00> : vector<8x8xf32>
    %45 = tpu.matmul %44, %32, %cst_20 {dimension_numbers = #tpu.dot_dimension_numbers<[1], [0], [0], [1], [0, 0, 1, 1], [], []>} : vector<8x8xf32>, vector<8x8xf32>, vector<8x8xf32> -> vector<8x8xf32>
    %46 = vector.extract_strided_slice %4 {offsets = [0, 8], sizes = [32, 8], strides = [1, 1]} : vector<32x32xf32> to vector<32x8xf32>
    %cst_21 = arith.constant dense<0.000000e+00> : vector<8x32xf32>
    %47 = tpu.matmul %45, %46, %cst_21 {dimension_numbers = #tpu.dot_dimension_numbers<[1], [1], [0], [0], [0, 0, 1, 0], [], []>} : vector<8x8xf32>, vector<32x8xf32>, vector<8x32xf32> -> vector<8x32xf32>
    %48 = arith.addf %29, %47 : vector<8x32xf32>
    %49 = vector.extract_strided_slice %8 {offsets = [0, 16], sizes = [8, 8], strides = [1, 1]} : vector<8x96xf32> to vector<8x8xf32>
    %50 = vector.extract_strided_slice %8 {offsets = [0, 48], sizes = [8, 8], strides = [1, 1]} : vector<8x96xf32> to vector<8x8xf32>
    %51 = vector.extract_strided_slice %8 {offsets = [0, 80], sizes = [8, 8], strides = [1, 1]} : vector<8x96xf32> to vector<8x8xf32>
    %cst_22 = arith.constant dense<0.000000e+00> : vector<8x8xf32>
    %52 = tpu.matmul %49, %50, %cst_22 {dimension_numbers = #tpu.dot_dimension_numbers<[1], [1], [0], [0], [0, 0, 1, 0], [], []>} : vector<8x8xf32>, vector<8x8xf32>, vector<8x8xf32> -> vector<8x8xf32>
    %cst_23 = arith.constant 0.353553385 : f32
    %53 = vector.broadcast %cst_23 : f32 to vector<8x8xf32>
    %54 = arith.mulf %52, %53 : vector<8x8xf32>
    %cst_24 = arith.constant dense<0xFF800000> : vector<8xf32>
    %55 = vector.multi_reduction <maximumf>, %54, %cst_24 [1] : vector<8x8xf32> to vector<8xf32>
    %56 = vector.shape_cast %55 : vector<8xf32> to vector<8x1xf32>
    %57 = vector.broadcast %56 : vector<8x1xf32> to vector<8x8xf32>
    %58 = arith.subf %54, %57 : vector<8x8xf32>
    %59 = math.exp %58 : vector<8x8xf32>
    %cst_25 = arith.constant dense<0.000000e+00> : vector<8xf32>
    %60 = vector.multi_reduction <add>, %59, %cst_25 [1] : vector<8x8xf32> to vector<8xf32>
    %61 = vector.shape_cast %60 : vector<8xf32> to vector<8x1xf32>
    %62 = vector.broadcast %61 : vector<8x1xf32> to vector<8x8xf32>
    %63 = arith.divf %59, %62 : vector<8x8xf32>
    %cst_26 = arith.constant dense<0.000000e+00> : vector<8x8xf32>
    %64 = tpu.matmul %63, %51, %cst_26 {dimension_numbers = #tpu.dot_dimension_numbers<[1], [0], [0], [1], [0, 0, 1, 1], [], []>} : vector<8x8xf32>, vector<8x8xf32>, vector<8x8xf32> -> vector<8x8xf32>
    %65 = vector.extract_strided_slice %4 {offsets = [0, 16], sizes = [32, 8], strides = [1, 1]} : vector<32x32xf32> to vector<32x8xf32>
    %cst_27 = arith.constant dense<0.000000e+00> : vector<8x32xf32>
    %66 = tpu.matmul %64, %65, %cst_27 {dimension_numbers = #tpu.dot_dimension_numbers<[1], [1], [0], [0], [0, 0, 1, 0], [], []>} : vector<8x8xf32>, vector<32x8xf32>, vector<8x32xf32> -> vector<8x32xf32>
    %67 = arith.addf %48, %66 : vector<8x32xf32>
    %68 = vector.extract_strided_slice %8 {offsets = [0, 24], sizes = [8, 8], strides = [1, 1]} : vector<8x96xf32> to vector<8x8xf32>
    %69 = vector.extract_strided_slice %8 {offsets = [0, 56], sizes = [8, 8], strides = [1, 1]} : vector<8x96xf32> to vector<8x8xf32>
    %70 = vector.extract_strided_slice %8 {offsets = [0, 88], sizes = [8, 8], strides = [1, 1]} : vector<8x96xf32> to vector<8x8xf32>
    %cst_28 = arith.constant dense<0.000000e+00> : vector<8x8xf32>
    %71 = tpu.matmul %68, %69, %cst_28 {dimension_numbers = #tpu.dot_dimension_numbers<[1], [1], [0], [0], [0, 0, 1, 0], [], []>} : vector<8x8xf32>, vector<8x8xf32>, vector<8x8xf32> -> vector<8x8xf32>
    %cst_29 = arith.constant 0.353553385 : f32
    %72 = vector.broadcast %cst_29 : f32 to vector<8x8xf32>
    %73 = arith.mulf %71, %72 : vector<8x8xf32>
    %cst_30 = arith.constant dense<0xFF800000> : vector<8xf32>
    %74 = vector.multi_reduction <maximumf>, %73, %cst_30 [1] : vector<8x8xf32> to vector<8xf32>
    %75 = vector.shape_cast %74 : vector<8xf32> to vector<8x1xf32>
    %76 = vector.broadcast %75 : vector<8x1xf32> to vector<8x8xf32>
    %77 = arith.subf %73, %76 : vector<8x8xf32>
    %78 = math.exp %77 : vector<8x8xf32>
    %cst_31 = arith.constant dense<0.000000e+00> : vector<8xf32>
    %79 = vector.multi_reduction <add>, %78, %cst_31 [1] : vector<8x8xf32> to vector<8xf32>
    %80 = vector.shape_cast %79 : vector<8xf32> to vector<8x1xf32>
    %81 = vector.broadcast %80 : vector<8x1xf32> to vector<8x8xf32>
    %82 = arith.divf %78, %81 : vector<8x8xf32>
    %cst_32 = arith.constant dense<0.000000e+00> : vector<8x8xf32>
    %83 = tpu.matmul %82, %70, %cst_32 {dimension_numbers = #tpu.dot_dimension_numbers<[1], [0], [0], [1], [0, 0, 1, 1], [], []>} : vector<8x8xf32>, vector<8x8xf32>, vector<8x8xf32> -> vector<8x8xf32>
    %84 = vector.extract_strided_slice %4 {offsets = [0, 24], sizes = [32, 8], strides = [1, 1]} : vector<32x32xf32> to vector<32x8xf32>
    %cst_33 = arith.constant dense<0.000000e+00> : vector<8x32xf32>
    %85 = tpu.matmul %83, %84, %cst_33 {dimension_numbers = #tpu.dot_dimension_numbers<[1], [1], [0], [0], [0, 0, 1, 0], [], []>} : vector<8x8xf32>, vector<32x8xf32>, vector<8x32xf32> -> vector<8x32xf32>
    %86 = arith.addf %67, %85 : vector<8x32xf32>
    %c0_34 = arith.constant 0 : index
    %c0_35 = arith.constant 0 : index
    %c0_36 = arith.constant 0 : index
    %87 = vector.load %arg6[%c0_34, %c0_35, %c0_36] : memref<1x8x32xf32, #tpu.memory_space<vmem>>, vector<1x8x32xf32>
    %88 = vector.shape_cast %87 : vector<1x8x32xf32> to vector<8x32xf32>
    %89 = vector.shape_cast %86 : vector<8x32xf32> to vector<1x8x32xf32>
    tpu.vector_store %arg6[%c0_34, %c0_35, %c0_36], %89 {strides = array<i32>} : memref<1x8x32xf32, #tpu.memory_space<vmem>>, vector<1x8x32xf32>,
    return
  }
  func.func @transform_0(%arg0: i32) -> (i32, i32, i32) {
    %c0_i32 = arith.constant 0 : i32
    %c0_i32_0 = arith.constant 0 : i32
    %c0_i32_1 = arith.constant 0 : i32
    return %arg0, %c0_i32, %c0_i32_0 : i32, i32, i32
  }
  func.func @transform_1(%arg0: i32) -> (i32, i32) {
    %c0_i32 = arith.constant 0 : i32
    %c0_i32_0 = arith.constant 0 : i32
    %c0_i32_1 = arith.constant 0 : i32
    return %c0_i32, %c0_i32_0 : i32, i32
  }
  func.func @transform_2(%arg0: i32) -> (i32, i32) {
    %c0_i32 = arith.constant 0 : i32
    %c0_i32_0 = arith.constant 0 : i32
    %c0_i32_1 = arith.constant 0 : i32
    return %c0_i32, %c0_i32_0 : i32, i32
  }
  func.func @transform_3(%arg0: i32) -> (i32, i32) {
    %c0_i32 = arith.constant 0 : i32
    %c0_i32_0 = arith.constant 0 : i32
    %c0_i32_1 = arith.constant 0 : i32
    return %c0_i32, %c0_i32_0 : i32, i32
  }
  func.func @transform_4(%arg0: i32) -> (i32, i32) {
    %c0_i32 = arith.constant 0 : i32
    %c0_i32_0 = arith.constant 0 : i32
    %c0_i32_1 = arith.constant 0 : i32
    return %c0_i32, %c0_i32_0 : i32, i32
  }
  func.func @transform_5(%arg0: i32) -> (i32, i32, i32) {
    %c0_i32 = arith.constant 0 : i32
    %c0_i32_0 = arith.constant 0 : i32
    %c0_i32_1 = arith.constant 0 : i32
    return %arg0, %c0_i32, %c0_i32_0 : i32, i32, i32
  }
}

</mosaic_0001>

<llo_original>
// kernel: tpu_custom_call.1
$region0: #{tpu_custom_call.1}
  #allocation0 [shape = 'u32[]', space=smem, size = 0x4, offset = 0x4, fixed_abs, tag = 'smem constant byte address 0x4 - core index']
  #allocation1 [shape = 'u32[72,128]{1,0:T(1,128)}', space=vmem, size = 0x9000, scoped, tag = 'internal scratch']
  %s0 = inlined_call_operand.vmem [shape: f32[2,8,32], index: 0, kind: input, shape index: {}]
  %s1 = inlined_call_operand.vmem [shape: f32[96,32], index: 1, kind: input, shape index: {}]
  %s2 = inlined_call_operand.vmem [shape: f32[1,96], index: 2, kind: input, shape index: {}]
  %s3 = inlined_call_operand.vmem [shape: f32[32,32], index: 3, kind: input, shape index: {}]
  %s4 = inlined_call_operand.vmem [shape: f32[1,32], index: 4, kind: input, shape index: {}]
  %s5 = inlined_call_operand.hbm [shape: f32[2,8,32], index: 5, kind: output, shape index: {}]
  %s6 = sld [smem:[#allocation0]]
  $region53: #{tpu_custom_call.1} parent=0
    _
  %s8 = ssub.s32 1, %s6
  %s9 = scalar_select 0, %s8, %s6
  $region1: #{tpu_custom_call.1} parent=0
    #allocation2 [shape = 'u8[8192]{0}', space=vmem, size = 0x2000, scoped, tag = 'output window, operand 0']
    #allocation3 [shape = 's32[2]{0}', space=sflag, size = 0x8, scoped, tag = 'scoped memory for tpu_custom_call.1']
    %10 = vsyncpa [#allocation3], 0
    %s11 = scalar_lea.sflag [#allocation3], 1
    %12 = vsyncpa %s11, 0
    loop: start=0, step=1, limit=4
    $region2: #{tpu_custom_call.1} parent=1 // loop_pre_header
      _
    $region3: #{tpu_custom_call.1} parent=1 // loop_header
      %s14 = sphi 0, %s18
      %p15 = scmp.ge.s32.totalorder %s14, 4
      %s24 = sphi 0, %s26
      %s27 = sphi 0, %s24
      %s28 = sphi 0, %s27
      %s44 = sphi 0, %s28
      %s48 = sphi 0, %s48
      %s50 = sphi 0, %s48
      %s51 = sphi 0, %s50
      %s65 = sphi 0, %s51
      %s69 = sphi 0, %s69
      %s71 = sphi 0, %s69
      %s72 = sphi 0, %s71
      %s86 = sphi 0, %s72
      %s90 = sphi 0, %s90
      %s92 = sphi 0, %s90
      %s93 = sphi 0, %s92
      %s107 = sphi 0, %s93
      %s111 = sphi 0, %s111
      %s113 = sphi 0, %s111
      %s114 = sphi 0, %s113
      %s128 = sphi 0, %s114
      %s134 = sphi 0, %s136
      %s137 = sphi 0, %s134
      %s138 = sphi 0, %s137
      %s154 = sphi 0, %s138
    $region4: #{tpu_custom_call.1} parent=1 // loop_header_branch
      %17 = sbr.rel (%p15) target = $region8
    $region5: #{tpu_custom_call.1} parent=1 // loop_body
      %s19 = ssub.s32 %s14, 1
      %s20 = ssub.s32 %s14, 2
      %s21 = sadd.s32 %s14, 1
      %s22 = ssub.s32 %s14, %s21
      %p23 = scmp.eq.s32.totalorder %s22, 0
      %s25 = sadd.s32 %s24, 1
      %s26 = scalar_select %p23, %s24, %s25
      %p29 = pneg %p23
      %p30 = scmp.eq.s32.totalorder %s14, 1
      %p31 = por %p29, %p30
      %p32 = scmp.ne.s32.totalorder %s24, %s27
      %p33 = scmp.eq.s32.totalorder %s14, 0
      %p34 = por %p32, %p33
      %p35 = scmp.ne.s32.totalorder %s24, %s27
      %p36 = scmp.eq.s32.totalorder %s19, 1
      %p37 = por %p35, %p36
      %p38 = scmp.ne.s32.totalorder %s27, %s28
      %p39 = scmp.eq.s32.totalorder %s19, 0
      %p40 = por %p38, %p39
      %p41 = scmp.ne.s32.totalorder %s27, %s28
      %p42 = scmp.eq.s32.totalorder %s20, 1
      %p43 = por %p41, %p42
      %p45 = scmp.ne.s32.totalorder %s28, %s44
      %p46 = scmp.eq.s32.totalorder %s20, 0
      %p47 = por %p45, %p46
      %s49 = sadd.s32 %s48, 1
      %p52 = scmp.eq.s32.totalorder %s14, 1
      %p53 = scmp.ne.s32.totalorder %s48, %s50
      %p54 = scmp.eq.s32.totalorder %s14, 0
      %p55 = por %p53, %p54
      %p56 = scmp.ne.s32.totalorder %s48, %s50
      %p57 = scmp.eq.s32.totalorder %s19, 1
      %p58 = por %p56, %p57
      %p59 = scmp.ne.s32.totalorder %s50, %s51
      %p60 = scmp.eq.s32.totalorder %s19, 0
      %p61 = por %p59, %p60
      %p62 = scmp.ne.s32.totalorder %s50, %s51
      %p63 = scmp.eq.s32.totalorder %s20, 1
      %p64 = por %p62, %p63
      %p66 = scmp.ne.s32.totalorder %s51, %s65
      %p67 = scmp.eq.s32.totalorder %s20, 0
      %p68 = por %p66, %p67
      %s70 = sadd.s32 %s69, 1
      %p73 = scmp.eq.s32.totalorder %s14, 1
      %p74 = scmp.ne.s32.totalorder %s69, %s71
      %p75 = scmp.eq.s32.totalorder %s14, 0
      %p76 = por %p74, %p75
      %p77 = scmp.ne.s32.totalorder %s69, %s71
      %p78 = scmp.eq.s32.totalorder %s19, 1
      %p79 = por %p77, %p78
      %p80 = scmp.ne.s32.totalorder %s71, %s72
      %p81 = scmp.eq.s32.totalorder %s19, 0
      %p82 = por %p80, %p81
      %p83 = scmp.ne.s32.totalorder %s71, %s72
      %p84 = scmp.eq.s32.totalorder %s20, 1
      %p85 = por %p83, %p84
      %p87 = scmp.ne.s32.totalorder %s72, %s86
      %p88 = scmp.eq.s32.totalorder %s20, 0
      %p89 = por %p87, %p88
      %s91 = sadd.s32 %s90, 1
      %p94 = scmp.eq.s32.totalorder %s14, 1
      %p95 = scmp.ne.s32.totalorder %s90, %s92
      %p96 = scmp.eq.s32.totalorder %s14, 0
      %p97 = por %p95, %p96
      %p98 = scmp.ne.s32.totalorder %s90, %s92
      %p99 = scmp.eq.s32.totalorder %s19, 1
      %p100 = por %p98, %p99
      %p101 = scmp.ne.s32.totalorder %s92, %s93
      %p102 = scmp.eq.s32.totalorder %s19, 0
      %p103 = por %p101, %p102
      %p104 = scmp.ne.s32.totalorder %s92, %s93
      %p105 = scmp.eq.s32.totalorder %s20, 1
      %p106 = por %p104, %p105
      %p108 = scmp.ne.s32.totalorder %s93, %s107
      %p109 = scmp.eq.s32.totalorder %s20, 0
      %p110 = por %p108, %p109
      %s112 = sadd.s32 %s111, 1
      %p115 = scmp.eq.s32.totalorder %s14, 1
      %p116 = scmp.ne.s32.totalorder %s111, %s113
      %p117 = scmp.eq.s32.totalorder %s14, 0
      %p118 = por %p116, %p117
      %p119 = scmp.ne.s32.totalorder %s111, %s113
      %p120 = scmp.eq.s32.totalorder %s19, 1
      %p121 = por %p119, %p120
      %p122 = scmp.ne.s32.totalorder %s113, %s114
      %p123 = scmp.eq.s32.totalorder %s19, 0
      %p124 = por %p122, %p123
      %p125 = scmp.ne.s32.totalorder %s113, %s114
      %p126 = scmp.eq.s32.totalorder %s20, 1
      %p127 = por %p125, %p126
      %p129 = scmp.ne.s32.totalorder %s114, %s128
      %p130 = scmp.eq.s32.totalorder %s20, 0
      %p131 = por %p129, %p130
      %s132 = ssub.s32 %s14, %s21
      %p133 = scmp.eq.s32.totalorder %s132, 0
      %s135 = sadd.s32 %s134, 1
      %s136 = scalar_select %p133, %s134, %s135
      %p139 = pneg %p133
      %p140 = scmp.eq.s32.totalorder %s14, 1
      %p141 = por %p139, %p140
      %p142 = scmp.ne.s32.totalorder %s134, %s137
      %p143 = scmp.eq.s32.totalorder %s14, 0
      %p144 = por %p142, %p143
      %p145 = scmp.ne.s32.totalorder %s134, %s137
      %p146 = scmp.eq.s32.totalorder %s19, 1
      %p147 = por %p145, %p146
      %p148 = scmp.ne.s32.totalorder %s137, %s138
      %p149 = scmp.eq.s32.totalorder %s19, 0
      %p150 = por %p148, %p149
      %p151 = scmp.ne.s32.totalorder %s137, %s138
      %p152 = scmp.eq.s32.totalorder %s20, 1
      %p153 = por %p151, %p152
      %p155 = scmp.ne.s32.totalorder %s138, %s154
      %p156 = scmp.eq.s32.totalorder %s20, 0
      %p157 = por %p155, %p156
      %p158 = scmp.le.s32.totalorder 1, %s14
      %p159 = scmp.lt.s32.totalorder %s14, 3
      %p160 = pnand %p158, %p159
      %p161 = pneg %p160
      // Predicated region
      $region9: #{tpu_custom_call.1} parent=5 // pred_check
        _
      $region10: #{tpu_custom_call.1} parent=5 // pred_check_branch
        %163 = sbr.rel (%p160) target = $region12
      $region11: #{tpu_custom_call.1} parent=5 // pred_region
        %s164 = ssub.s32 %s14, 1
        // Predicated region
        $region13: #{tpu_custom_call.1} parent=11 // pred_check
          %p165 = pneg %p61
        $region14: #{tpu_custom_call.1} parent=11 // pred_check_branch
          %167 = sbr.rel (%p165) target = $region16
        $region15: #{tpu_custom_call.1} parent=11 // pred_region
          _
        $region16: #{tpu_custom_call.1} parent=11 // pred_fallthru
          _
        // Predicated region
        $region17: #{tpu_custom_call.1} parent=11 // pred_check
          %p168 = pneg %p82
        $region18: #{tpu_custom_call.1} parent=11 // pred_check_branch
          %170 = sbr.rel (%p168) target = $region20
        $region19: #{tpu_custom_call.1} parent=11 // pred_region
          _
        $region20: #{tpu_custom_call.1} parent=11 // pred_fallthru
          _
        // Predicated region
        $region21: #{tpu_custom_call.1} parent=11 // pred_check
          %p171 = pneg %p103
        $region22: #{tpu_custom_call.1} parent=11 // pred_check_branch
          %173 = sbr.rel (%p171) target = $region24
        $region23: #{tpu_custom_call.1} parent=11 // pred_region
          _
        $region24: #{tpu_custom_call.1} parent=11 // pred_fallthru
          _
        // Predicated region
        $region25: #{tpu_custom_call.1} parent=11 // pred_check
          %p174 = pneg %p124
        $region26: #{tpu_custom_call.1} parent=11 // pred_check_branch
          %176 = sbr.rel (%p174) target = $region28
        $region27: #{tpu_custom_call.1} parent=11 // pred_region
          _
        $region28: #{tpu_custom_call.1} parent=11 // pred_fallthru
          _
      $region12: #{tpu_custom_call.1} parent=5 // pred_fallthru
        _
      %p177 = scmp.lt.s32.totalorder %s14, 2
      // Predicated region
      $region29: #{tpu_custom_call.1} parent=5 // pred_check
        %p178 = pneg %p177
      $region30: #{tpu_custom_call.1} parent=5 // pred_check_branch
        %180 = sbr.rel (%p178) target = $region32
      $region31: #{tpu_custom_call.1} parent=5 // pred_region
        // Predicated region
        $region33: #{tpu_custom_call.1} parent=31 // pred_check
          %p181 = pneg %p34
        $region34: #{tpu_custom_call.1} parent=31 // pred_check_branch
          %183 = sbr.rel (%p181) target = $region36
        $region35: #{tpu_custom_call.1} parent=31 // pred_region
          %p184 = scmp.lt.s32.totalorder %s14, 1
          %s185 = scalar_select %p184, %s14, 1
          %s186 = smul.addr %s185, 8
          %s187 = scalar_lea.vmem %s0, %s186
        $region36: #{tpu_custom_call.1} parent=31 // pred_fallthru
          _
      $region32: #{tpu_custom_call.1} parent=5 // pred_fallthru
        _
      %p188 = scmp.le.s32.totalorder 1, %s14
      %p189 = scmp.lt.s32.totalorder %s14, 3
      %p190 = pnand %p188, %p189
      %p191 = pneg %p190
      // Predicated region
      $region37: #{tpu_custom_call.1} parent=5 // pred_check
        _
      $region38: #{tpu_custom_call.1} parent=5 // pred_check_branch
        %193 = sbr.rel (%p190) target = $region40
      $region39: #{tpu_custom_call.1} parent=5 // pred_region
        %s194 = ssub.s32 %s14, 1
        %p195 = scmp.lt.s32.totalorder %s19, 1
        %s196 = scalar_select %p195, %s19, 1
        %s197 = smul.addr %s196, 8
        %s198 = scalar_lea.vmem %s0, %s197
        %p199 = pneg %p40
        %p200 = pneg %p37
        %p201 = pneg %p61
        %p202 = pneg %p58
        %p203 = pneg %p82
        %p204 = pneg %p79
        %p205 = pneg %p103
        %p206 = pneg %p100
        %p207 = pneg %p124
        %p208 = pneg %p121
        %p209 = pneg %p150
        %p210 = pneg %p147
        %s211 = sand.u32 %s137, 1
        %s212 = scalar_lea.sflag [#allocation3], %s211
        %s213 = sand.u32 %s137, 1
        %s214 = smul.addr %s213, 8
        %s215 = scalar_lea.vmem [#allocation2], %s214
        %p216 = scmp.lt.s32.totalorder %s19, 1
        %s217 = scalar_select %p216, %s19, 1
        %s218 = smul.addr %s217, 8
        %s219 = scalar_lea.vmem %s0, %s218
        %v220 = vld [vmem:[%s219] sm:$0xff]
        %v221 = vld [vmem:[%s1] sm:$0xff]
        %v222 = vld [vmem:[%s1 + $0x8] sm:$0xff]
        %v223 = vld [vmem:[%s1 + $0x10] sm:$0xff]
        %v224 = vld [vmem:[%s1 + $0x18] sm:$0xff]
        %v225 = vld [vmem:[%s1 + $0x20] sm:$0xff]
        %v226 = vld [vmem:[%s1 + $0x28] sm:$0xff]
        %v227 = vld [vmem:[%s1 + $0x30] sm:$0xff]
        %v228 = vld [vmem:[%s1 + $0x38] sm:$0xff]
        %v229 = vld [vmem:[%s1 + $0x40] sm:$0xff]
        %v230 = vld [vmem:[%s1 + $0x48] sm:$0xff]
        %v231 = vld [vmem:[%s1 + $0x50] sm:$0xff]
        %v232 = vld [vmem:[%s1 + $0x58] sm:$0xff]
        %v233 = vld [vmem:[%s2] sm:$0x1]
        %v234 = vld [vmem:[%s3] sm:$0xff]
        %v235 = vld [vmem:[%s3 + $0x8] sm:$0xff]
        %v236 = vld [vmem:[%s3 + $0x10] sm:$0xff]
        %v237 = vld [vmem:[%s3 + $0x18] sm:$0xff]
        %v238 = vld [vmem:[%s4] sm:$0x1]
        %v240 = vperm.slane %v233, 0
        %vm242 = vcmask 261120
        %v244 = vsel %vm242, %v220, 0
        %v247 = vsel %vm242, %v221, 0
        %v250 = vsel %vm242, %v222, 0
        %v253 = vsel %vm242, %v223, 0
        %v256 = vsel %vm242, %v224, 0
        %v259 = vsel %vm242, %v225, 0
        %v262 = vsel %vm242, %v226, 0
        %v265 = vsel %vm242, %v227, 0
        %v268 = vsel %vm242, %v228, 0
        %v271 = vsel %vm242, %v229, 0
        %v274 = vsel %vm242, %v230, 0
        %v277 = vsel %vm242, %v231, 0
        %v280 = vsel %vm242, %v232, 0
        %282 = vmatpush.xpose.msra.mxu0 0.0
        %283 = vmatpush.xpose.msra.mxu0 0.0
        %284 = vmatpush.xpose.msra.mxu0 0.0
        %285 = vmatpush.xpose.msra.mxu0 0.0
        %286 = vmatpush.xpose.msra.mxu0 %v280
        %287 = vmatpush.xpose.msra.mxu0 %v277
        %288 = vmatpush.xpose.msra.mxu0 %v274
        %289 = vmatpush.xpose.msra.mxu0 %v271
        %290 = vmatpush.xpose.msra.mxu0 %v268
        %291 = vmatpush.xpose.msra.mxu0 %v265
        %292 = vmatpush.xpose.msra.mxu0 %v262
        %293 = vmatpush.xpose.msra.mxu0 %v259
        %294 = vmatpush.xpose.msra.mxu0 %v256
        %295 = vmatpush.xpose.msra.mxu0 %v253
        %296 = vmatpush.xpose.msra.mxu0 %v250
        %297 = vmatpush.xpose.msra.mxu0 %v247
        %298 = vmatmul.f32.gmra.mxu0 %v244
        %v299 = vpop.f32.mrf.mxu0
        %v300 = vadd.f32 %v240, %v299
        %301 = vdwg.mxu0
        %v303 = vperm.slane %v238, 0
        %306 = vrot.lane.b32.xlu0 %v300, 96
        %v307 = vpop.permute.xlu0 %306
        %vm308 = vcmask 64512
        %v309 = vsel %vm308, %v300, 0
        %v311 = vsel %vm308, %v307, 0
        %313 = vmatpush.xpose.msra.mxu0 0.0
        %314 = vmatpush.xpose.msra.mxu0 0.0
        %315 = vmatpush.xpose.msra.mxu0 0.0
        %316 = vmatpush.xpose.msra.mxu0 0.0
        %317 = vmatpush.xpose.msra.mxu0 0.0
        %318 = vmatpush.xpose.msra.mxu0 0.0
        %319 = vmatpush.xpose.msra.mxu0 0.0
        %320 = vmatpush.xpose.msra.mxu0 0.0
        %321 = vmatpush.xpose.msra.mxu0 0.0
        %322 = vmatpush.xpose.msra.mxu0 0.0
        %323 = vmatpush.xpose.msra.mxu0 0.0
        %324 = vmatpush.xpose.msra.mxu0 0.0
        %325 = vmatpush.xpose.msra.mxu0 0.0
        %326 = vmatpush.xpose.msra.mxu0 0.0
        %327 = vmatpush.xpose.msra.mxu0 0.0
        %328 = vmatpush.xpose.msra.mxu0 %v311
        %329 = vmatmul.f32.gmra.mxu0 %v309
        %v330 = vpop.f32.mrf.mxu0
        %v331 = vadd.f32 0.0, %v330
        %332 = vdwg.mxu0
        %v333 = vmul.f32 %v331, 0.35355338
        %v334 = vsel %vm308, %v333, -inf
        %335 = vmax.xlane.f32.xlu0 %v334
        %v336 = vpop.xlane.xlu0 %335
        %v337 = vsub.f32 %v333, %v336
        %v338 = vmul.f32 %v337, 1.442695
        %v339 = vpow.pop %v338
        %v340 = vsel %vm308, %v339, 0.0
        %341 = vadd.xlane.f32.xlu0 %v340
        %v342 = vpop.xlane.xlu0 %341
        %v343 = vrcp.pop %v342
        %v344 = vmul.f32 %v342, %v343
        %v345 = vsub.f32 1.0, %v344
        %v346 = vmul.f32 %v343, %v345
        %v347 = vadd.f32 %v343, %v346
        %vm348 = vweird.f32 %v342
        %vm349 = vweird.f32 %v343
        %vm350 = vmor %vm348, %vm349
        %v351 = vsel %vm350, %v343, %v347
        %v352 = vand.u32 2147483647, %v342
        %vm353 = vcmp.eq.f32.partialorder %v352, 8.507059e+37
        %v354 = vand.u32 %v342, 2147483648
        %v355 = vor.u32 1.1754944e-38, %v354
        %v356 = vsel %vm353, %v355, %v351
        %v357 = vmul.f32 %v339, %v356
        %358 = vrot.lane.b32.xlu0 %v300, 64
        %v359 = vpop.permute.xlu0 %358
        %v362 = vsel %vm308, %v357, 0
        %364 = vmatpush.msra.mxu0 0.0
        %365 = vmatpush.msra.mxu0 0.0
        %366 = vmatpush.msra.mxu0 0.0
        %367 = vmatpush.msra.mxu0 0.0
        %368 = vmatpush.msra.mxu0 0.0
        %369 = vmatpush.msra.mxu0 0.0
        %370 = vmatpush.msra.mxu0 0.0
        %371 = vmatpush.msra.mxu0 0.0
        %372 = vmatpush.msra.mxu0 0.0
        %373 = vmatpush.msra.mxu0 0.0
        %374 = vmatpush.msra.mxu0 0.0
        %375 = vmatpush.msra.mxu0 0.0
        %376 = vmatpush.msra.mxu0 0.0
        %377 = vmatpush.msra.mxu0 0.0
        %378 = vmatpush.msra.mxu0 0.0
        %379 = vmatpush.msra.mxu0 %v359
        %380 = vmatmul.f32.gmra.mxu0 %v362
        %v381 = vpop.f32.mrf.mxu0
        %v382 = vadd.f32 0.0, %v381
        %383 = vdwg.mxu0
        %v385 = vsel %vm308, %v382, 0
        %v388 = vsel %vm308, %v234, 0
        %v391 = vsel %vm308, %v235, 0
        %v394 = vsel %vm308, %v236, 0
        %v397 = vsel %vm308, %v237, 0
        %399 = vmatpush.xpose.msra.mxu0 0.0
        %400 = vmatpush.xpose.msra.mxu0 0.0
        %401 = vmatpush.xpose.msra.mxu0 0.0
        %402 = vmatpush.xpose.msra.mxu0 0.0
        %403 = vmatpush.xpose.msra.mxu0 0.0
        %404 = vmatpush.xpose.msra.mxu0 0.0
        %405 = vmatpush.xpose.msra.mxu0 0.0
        %406 = vmatpush.xpose.msra.mxu0 0.0
        %407 = vmatpush.xpose.msra.mxu0 0.0
        %408 = vmatpush.xpose.msra.mxu0 0.0
        %409 = vmatpush.xpose.msra.mxu0 0.0
        %410 = vmatpush.xpose.msra.mxu0 0.0
        %411 = vmatpush.xpose.msra.mxu0 %v397
        %412 = vmatpush.xpose.msra.mxu0 %v394
        %413 = vmatpush.xpose.msra.mxu0 %v391
        %414 = vmatpush.xpose.msra.mxu0 %v388
        %415 = vmatmul.f32.gmra.mxu0 %v385
        %v416 = vpop.f32.mrf.mxu0
        %v417 = vadd.f32 0.0, %v416
        %418 = vdwg.mxu0
        %v419 = vadd.f32 %v303, %v417
        %420 = vrot.lane.b32.xlu0 %v300, 120
        %v421 = vpop.permute.xlu0 %420
        %422 = vrot.lane.b32.xlu0 %v300, 88
        %v423 = vpop.permute.xlu0 %422
        %v424 = vsel %vm308, %v421, 0
        %v426 = vsel %vm308, %v423, 0
        %428 = vmatpush.xpose.msra.mxu0 0.0
        %429 = vmatpush.xpose.msra.mxu0 0.0
        %430 = vmatpush.xpose.msra.mxu0 0.0
        %431 = vmatpush.xpose.msra.mxu0 0.0
        %432 = vmatpush.xpose.msra.mxu0 0.0
        %433 = vmatpush.xpose.msra.mxu0 0.0
        %434 = vmatpush.xpose.msra.mxu0 0.0
        %435 = vmatpush.xpose.msra.mxu0 0.0
        %436 = vmatpush.xpose.msra.mxu0 0.0
        %437 = vmatpush.xpose.msra.mxu0 0.0
        %438 = vmatpush.xpose.msra.mxu0 0.0
        %439 = vmatpush.xpose.msra.mxu0 0.0
        %440 = vmatpush.xpose.msra.mxu0 0.0
        %441 = vmatpush.xpose.msra.mxu0 0.0
        %442 = vmatpush.xpose.msra.mxu0 0.0
        %443 = vmatpush.xpose.msra.mxu0 %v426
        %444 = vmatmul.f32.gmra.mxu0 %v424
        %v445 = vpop.f32.mrf.mxu0
        %v446 = vadd.f32 0.0, %v445
        %447 = vdwg.mxu0
        %v448 = vmul.f32 %v446, 0.35355338
        %v449 = vsel %vm308, %v448, -inf
        %450 = vmax.xlane.f32.xlu0 %v449
        %v451 = vpop.xlane.xlu0 %450
        %v452 = vsub.f32 %v448, %v451
        %v453 = vmul.f32 %v452, 1.442695
        %v454 = vpow.pop %v453
        %v455 = vsel %vm308, %v454, 0.0
        %456 = vadd.xlane.f32.xlu0 %v455
        %v457 = vpop.xlane.xlu0 %456
        %v458 = vrcp.pop %v457
        %v459 = vmul.f32 %v457, %v458
        %v460 = vsub.f32 1.0, %v459
        %v461 = vmul.f32 %v458, %v460
        %v462 = vadd.f32 %v458, %v461
        %vm463 = vweird.f32 %v457
        %vm464 = vweird.f32 %v458
        %vm465 = vmor %vm463, %vm464
        %v466 = vsel %vm465, %v458, %v462
        %v467 = vand.u32 2147483647, %v457
        %vm468 = vcmp.eq.f32.partialorder %v467, 8.507059e+37
        %v469 = vand.u32 %v457, 2147483648
        %v470 = vor.u32 1.1754944e-38, %v469
        %v471 = vsel %vm468, %v470, %v466
        %v472 = vmul.f32 %v454, %v471
        %473 = vrot.lane.b32.xlu0 %v300, 56
        %v474 = vpop.permute.xlu0 %473
        %v477 = vsel %vm308, %v472, 0
        %479 = vmatpush.msra.mxu0 0.0
        %480 = vmatpush.msra.mxu0 0.0
        %481 = vmatpush.msra.mxu0 0.0
        %482 = vmatpush.msra.mxu0 0.0
        %483 = vmatpush.msra.mxu0 0.0
        %484 = vmatpush.msra.mxu0 0.0
        %485 = vmatpush.msra.mxu0 0.0
        %486 = vmatpush.msra.mxu0 0.0
        %487 = vmatpush.msra.mxu0 0.0
        %488 = vmatpush.msra.mxu0 0.0
        %489 = vmatpush.msra.mxu0 0.0
        %490 = vmatpush.msra.mxu0 0.0
        %491 = vmatpush.msra.mxu0 0.0
        %492 = vmatpush.msra.mxu0 0.0
        %493 = vmatpush.msra.mxu0 0.0
        %494 = vmatpush.msra.mxu0 %v474
        %495 = vmatmul.f32.gmra.mxu0 %v477
        %v496 = vpop.f32.mrf.mxu0
        %v497 = vadd.f32 0.0, %v496
        %498 = vdwg.mxu0
        %499 = vrot.lane.b32.xlu0 %v234, 120
        %v500 = vpop.permute.xlu0 %499
        %501 = vrot.lane.b32.xlu0 %v235, 120
        %v502 = vpop.permute.xlu0 %501
        %503 = vrot.lane.b32.xlu0 %v236, 120
        %v504 = vpop.permute.xlu0 %503
        %505 = vrot.lane.b32.xlu0 %v237, 120
        %v506 = vpop.permute.xlu0 %505
        %v508 = vsel %vm308, %v497, 0
        %v510 = vsel %vm308, %v500, 0
        %v512 = vsel %vm308, %v502, 0
        %v514 = vsel %vm308, %v504, 0
        %v516 = vsel %vm308, %v506, 0
        %518 = vmatpush.xpose.msra.mxu0 0.0
        %519 = vmatpush.xpose.msra.mxu0 0.0
        %520 = vmatpush.xpose.msra.mxu0 0.0
        %521 = vmatpush.xpose.msra.mxu0 0.0
        %522 = vmatpush.xpose.msra.mxu0 0.0
        %523 = vmatpush.xpose.msra.mxu0 0.0
        %524 = vmatpush.xpose.msra.mxu0 0.0
        %525 = vmatpush.xpose.msra.mxu0 0.0
        %526 = vmatpush.xpose.msra.mxu0 0.0
        %527 = vmatpush.xpose.msra.mxu0 0.0
        %528 = vmatpush.xpose.msra.mxu0 0.0
        %529 = vmatpush.xpose.msra.mxu0 0.0
        %530 = vmatpush.xpose.msra.mxu0 %v516
        %531 = vmatpush.xpose.msra.mxu0 %v514
        %532 = vmatpush.xpose.msra.mxu0 %v512
        %533 = vmatpush.xpose.msra.mxu0 %v510
        %534 = vmatmul.f32.gmra.mxu0 %v508
        %v535 = vpop.f32.mrf.mxu0
        %v536 = vadd.f32 0.0, %v535
        %537 = vdwg.mxu0
        %v538 = vadd.f32 %v419, %v536
        %539 = vrot.lane.b32.xlu0 %v300, 112
        %v540 = vpop.permute.xlu0 %539
        %541 = vrot.lane.b32.xlu0 %v300, 80
        %v542 = vpop.permute.xlu0 %541
        %v543 = vsel %vm308, %v540, 0
        %v545 = vsel %vm308, %v542, 0
        %547 = vmatpush.xpose.msra.mxu0 0.0
        %548 = vmatpush.xpose.msra.mxu0 0.0
        %549 = vmatpush.xpose.msra.mxu0 0.0
        %550 = vmatpush.xpose.msra.mxu0 0.0
        %551 = vmatpush.xpose.msra.mxu0 0.0
        %552 = vmatpush.xpose.msra.mxu0 0.0
        %553 = vmatpush.xpose.msra.mxu0 0.0
        %554 = vmatpush.xpose.msra.mxu0 0.0
        %555 = vmatpush.xpose.msra.mxu0 0.0
        %556 = vmatpush.xpose.msra.mxu0 0.0
        %557 = vmatpush.xpose.msra.mxu0 0.0
        %558 = vmatpush.xpose.msra.mxu0 0.0
        %559 = vmatpush.xpose.msra.mxu0 0.0
        %560 = vmatpush.xpose.msra.mxu0 0.0
        %561 = vmatpush.xpose.msra.mxu0 0.0
        %562 = vmatpush.xpose.msra.mxu0 %v545
        %563 = vmatmul.f32.gmra.mxu0 %v543
        %v564 = vpop.f32.mrf.mxu0
        %v565 = vadd.f32 0.0, %v564
        %566 = vdwg.mxu0
        %v567 = vmul.f32 %v565, 0.35355338
        %v568 = vsel %vm308, %v567, -inf
        %569 = vmax.xlane.f32.xlu0 %v568
        %v570 = vpop.xlane.xlu0 %569
        %v571 = vsub.f32 %v567, %v570
        %v572 = vmul.f32 %v571, 1.442695
        %v573 = vpow.pop %v572
        %v574 = vsel %vm308, %v573, 0.0
        %575 = vadd.xlane.f32.xlu0 %v574
        %v576 = vpop.xlane.xlu0 %575
        %v577 = vrcp.pop %v576
        %v578 = vmul.f32 %v576, %v577
        %v579 = vsub.f32 1.0, %v578
        %v580 = vmul.f32 %v577, %v579
        %v581 = vadd.f32 %v577, %v580
        %vm582 = vweird.f32 %v576
        %vm583 = vweird.f32 %v577
        %vm584 = vmor %vm582, %vm583
        %v585 = vsel %vm584, %v577, %v581
        %v586 = vand.u32 2147483647, %v576
        %vm587 = vcmp.eq.f32.partialorder %v586, 8.507059e+37
        %v588 = vand.u32 %v576, 2147483648
        %v589 = vor.u32 1.1754944e-38, %v588
        %v590 = vsel %vm587, %v589, %v585
        %v591 = vmul.f32 %v573, %v590
        %592 = vrot.lane.b32.xlu0 %v300, 48
        %v593 = vpop.permute.xlu0 %592
        %v596 = vsel %vm308, %v591, 0
        %598 = vmatpush.msra.mxu0 0.0
        %599 = vmatpush.msra.mxu0 0.0
        %600 = vmatpush.msra.mxu0 0.0
        %601 = vmatpush.msra.mxu0 0.0
        %602 = vmatpush.msra.mxu0 0.0
        %603 = vmatpush.msra.mxu0 0.0
        %604 = vmatpush.msra.mxu0 0.0
        %605 = vmatpush.msra.mxu0 0.0
        %606 = vmatpush.msra.mxu0 0.0
        %607 = vmatpush.msra.mxu0 0.0
        %608 = vmatpush.msra.mxu0 0.0
        %609 = vmatpush.msra.mxu0 0.0
        %610 = vmatpush.msra.mxu0 0.0
        %611 = vmatpush.msra.mxu0 0.0
        %612 = vmatpush.msra.mxu0 0.0
        %613 = vmatpush.msra.mxu0 %v593
        %614 = vmatmul.f32.gmra.mxu0 %v596
        %v615 = vpop.f32.mrf.mxu0
        %v616 = vadd.f32 0.0, %v615
        %617 = vdwg.mxu0
        %618 = vrot.lane.b32.xlu0 %v234, 112
        %v619 = vpop.permute.xlu0 %618
        %620 = vrot.lane.b32.xlu0 %v235, 112
        %v621 = vpop.permute.xlu0 %620
        %622 = vrot.lane.b32.xlu0 %v236, 112
        %v623 = vpop.permute.xlu0 %622
        %624 = vrot.lane.b32.xlu0 %v237, 112
        %v625 = vpop.permute.xlu0 %624
        %v627 = vsel %vm308, %v616, 0
        %v629 = vsel %vm308, %v619, 0
        %v631 = vsel %vm308, %v621, 0
        %v633 = vsel %vm308, %v623, 0
        %v635 = vsel %vm308, %v625, 0
        %637 = vmatpush.xpose.msra.mxu0 0.0
        %638 = vmatpush.xpose.msra.mxu0 0.0
        %639 = vmatpush.xpose.msra.mxu0 0.0
        %640 = vmatpush.xpose.msra.mxu0 0.0
        %641 = vmatpush.xpose.msra.mxu0 0.0
        %642 = vmatpush.xpose.msra.mxu0 0.0
        %643 = vmatpush.xpose.msra.mxu0 0.0
        %644 = vmatpush.xpose.msra.mxu0 0.0
        %645 = vmatpush.xpose.msra.mxu0 0.0
        %646 = vmatpush.xpose.msra.mxu0 0.0
        %647 = vmatpush.xpose.msra.mxu0 0.0
        %648 = vmatpush.xpose.msra.mxu0 0.0
        %649 = vmatpush.xpose.msra.mxu0 %v635
        %650 = vmatpush.xpose.msra.mxu0 %v633
        %651 = vmatpush.xpose.msra.mxu0 %v631
        %652 = vmatpush.xpose.msra.mxu0 %v629
        %653 = vmatmul.f32.gmra.mxu0 %v627
        %v654 = vpop.f32.mrf.mxu0
        %v655 = vadd.f32 0.0, %v654
        %656 = vdwg.mxu0
        %v657 = vadd.f32 %v538, %v655
        %658 = vrot.lane.b32.xlu0 %v300, 104
        %v659 = vpop.permute.xlu0 %658
        %660 = vrot.lane.b32.xlu0 %v300, 72
        %v661 = vpop.permute.xlu0 %660
        %v662 = vsel %vm308, %v659, 0
        %v664 = vsel %vm308, %v661, 0
        %666 = vmatpush.xpose.msra.mxu0 0.0
        %667 = vmatpush.xpose.msra.mxu0 0.0
        %668 = vmatpush.xpose.msra.mxu0 0.0
        %669 = vmatpush.xpose.msra.mxu0 0.0
        %670 = vmatpush.xpose.msra.mxu0 0.0
        %671 = vmatpush.xpose.msra.mxu0 0.0
        %672 = vmatpush.xpose.msra.mxu0 0.0
        %673 = vmatpush.xpose.msra.mxu0 0.0
        %674 = vmatpush.xpose.msra.mxu0 0.0
        %675 = vmatpush.xpose.msra.mxu0 0.0
        %676 = vmatpush.xpose.msra.mxu0 0.0
        %677 = vmatpush.xpose.msra.mxu0 0.0
        %678 = vmatpush.xpose.msra.mxu0 0.0
        %679 = vmatpush.xpose.msra.mxu0 0.0
        %680 = vmatpush.xpose.msra.mxu0 0.0
        %681 = vmatpush.xpose.msra.mxu0 %v664
        %682 = vmatmul.f32.gmra.mxu0 %v662
        %v683 = vpop.f32.mrf.mxu0
        %v684 = vadd.f32 0.0, %v683
        %685 = vdwg.mxu0
        %v686 = vmul.f32 %v684, 0.35355338
        %v687 = vsel %vm308, %v686, -inf
        %688 = vmax.xlane.f32.xlu0 %v687
        %v689 = vpop.xlane.xlu0 %688
        %v690 = vsub.f32 %v686, %v689
        %v691 = vmul.f32 %v690, 1.442695
        %v692 = vpow.pop %v691
        %v693 = vsel %vm308, %v692, 0.0
        %694 = vadd.xlane.f32.xlu0 %v693
        %v695 = vpop.xlane.xlu0 %694
        %v696 = vrcp.pop %v695
        %v697 = vmul.f32 %v695, %v696
        %v698 = vsub.f32 1.0, %v697
        %v699 = vmul.f32 %v696, %v698
        %v700 = vadd.f32 %v696, %v699
        %vm701 = vweird.f32 %v695
        %vm702 = vweird.f32 %v696
        %vm703 = vmor %vm701, %vm702
        %v704 = vsel %vm703, %v696, %v700
        %v705 = vand.u32 2147483647, %v695
        %vm706 = vcmp.eq.f32.partialorder %v705, 8.507059e+37
        %v707 = vand.u32 %v695, 2147483648
        %v708 = vor.u32 1.1754944e-38, %v707
        %v709 = vsel %vm706, %v708, %v704
        %v710 = vmul.f32 %v692, %v709
        %711 = vrot.lane.b32.xlu0 %v300, 40
        %v712 = vpop.permute.xlu0 %711
        %v715 = vsel %vm308, %v710, 0
        %717 = vmatpush.msra.mxu0 0.0
        %718 = vmatpush.msra.mxu0 0.0
        %719 = vmatpush.msra.mxu0 0.0
        %720 = vmatpush.msra.mxu0 0.0
        %721 = vmatpush.msra.mxu0 0.0
        %722 = vmatpush.msra.mxu0 0.0
        %723 = vmatpush.msra.mxu0 0.0
        %724 = vmatpush.msra.mxu0 0.0
        %725 = vmatpush.msra.mxu0 0.0
        %726 = vmatpush.msra.mxu0 0.0
        %727 = vmatpush.msra.mxu0 0.0
        %728 = vmatpush.msra.mxu0 0.0
        %729 = vmatpush.msra.mxu0 0.0
        %730 = vmatpush.msra.mxu0 0.0
        %731 = vmatpush.msra.mxu0 0.0
        %732 = vmatpush.msra.mxu0 %v712
        %733 = vmatmul.f32.gmra.mxu0 %v715
        %v734 = vpop.f32.mrf.mxu0
        %v735 = vadd.f32 0.0, %v734
        %736 = vdwg.mxu0
        %737 = vrot.lane.b32.xlu0 %v234, 104
        %v738 = vpop.permute.xlu0 %737
        %739 = vrot.lane.b32.xlu0 %v235, 104
        %v740 = vpop.permute.xlu0 %739
        %741 = vrot.lane.b32.xlu0 %v236, 104
        %v742 = vpop.permute.xlu0 %741
        %743 = vrot.lane.b32.xlu0 %v237, 104
        %v744 = vpop.permute.xlu0 %743
        %v746 = vsel %vm308, %v735, 0
        %v748 = vsel %vm308, %v738, 0
        %v750 = vsel %vm308, %v740, 0
        %v752 = vsel %vm308, %v742, 0
        %v754 = vsel %vm308, %v744, 0
        %756 = vmatpush.xpose.msra.mxu0 0.0
        %757 = vmatpush.xpose.msra.mxu0 0.0
        %758 = vmatpush.xpose.msra.mxu0 0.0
        %759 = vmatpush.xpose.msra.mxu0 0.0
        %760 = vmatpush.xpose.msra.mxu0 0.0
        %761 = vmatpush.xpose.msra.mxu0 0.0
        %762 = vmatpush.xpose.msra.mxu0 0.0
        %763 = vmatpush.xpose.msra.mxu0 0.0
        %764 = vmatpush.xpose.msra.mxu0 0.0
        %765 = vmatpush.xpose.msra.mxu0 0.0
        %766 = vmatpush.xpose.msra.mxu0 0.0
        %767 = vmatpush.xpose.msra.mxu0 0.0
        %768 = vmatpush.xpose.msra.mxu0 %v754
        %769 = vmatpush.xpose.msra.mxu0 %v752
        %770 = vmatpush.xpose.msra.mxu0 %v750
        %771 = vmatpush.xpose.msra.mxu0 %v748
        %772 = vmatmul.f32.gmra.mxu0 %v746
        %v773 = vpop.f32.mrf.mxu0
        %v774 = vadd.f32 0.0, %v773
        %775 = vdwg.mxu0
        %v776 = vadd.f32 %v657, %v774
        %777 = vst.msk [vmem:[%s215] sm:$0xff] %vm242, %v776
        %s778 = sand.u32 %s137, 1
        %s779 = scalar_lea.sflag [#allocation3], %s778
        %s780 = sand.u32 %s137, 1
        %s781 = smul.addr %s780, 8
        %s782 = scalar_lea.vmem [#allocation2], %s781
        // Predicated region
        $region41: #{tpu_custom_call.1} parent=39 // pred_check
          %p783 = pneg %p147
        $region42: #{tpu_custom_call.1} parent=39 // pred_check_branch
          %785 = sbr.rel (%p783) target = $region44
        $region43: #{tpu_custom_call.1} parent=39 // pred_region
          %787 = vsyncadd %s779, 0
          %s788 = smul.addr %s19, 8
          %s789 = scalar_lea.hbm %s5, %s788
          %s791 = sshll.u32 %s782, 4
          %s792 = int_to_ptr.vmem [resolvable:$true] %s791
          %s793 = sshll.u32 %s789, 4
          %s794 = int_to_ptr.hbm [resolvable:$true] %s793
          %796 = dma.vmem_to_hbm [thread:$0]  %s792, 128, %s794, %s779
        $region44: #{tpu_custom_call.1} parent=39 // pred_fallthru
          _
      $region40: #{tpu_custom_call.1} parent=5 // pred_fallthru
        _
      %p797 = scmp.le.s32.totalorder 2, %s14
      // Predicated region
      $region45: #{tpu_custom_call.1} parent=5 // pred_check
        %p798 = pneg %p797
      $region46: #{tpu_custom_call.1} parent=5 // pred_check_branch
        %800 = sbr.rel (%p798) target = $region48
      $region47: #{tpu_custom_call.1} parent=5 // pred_region
        %s801 = ssub.s32 %s14, 2
        // Predicated region
        $region49: #{tpu_custom_call.1} parent=47 // pred_check
          %p802 = pneg %p153
        $region50: #{tpu_custom_call.1} parent=47 // pred_check_branch
          %804 = sbr.rel (%p802) target = $region52
        $region51: #{tpu_custom_call.1} parent=47 // pred_region
          %s805 = sand.u32 %s138, 1
          %s806 = scalar_lea.sflag [#allocation3], %s805
          %s807 = sand.u32 %s138, 1
          %s808 = smul.addr %s807, 8
          %s809 = scalar_lea.vmem [#allocation2], %s808
          %811 = dma.done %s806, 128
        $region52: #{tpu_custom_call.1} parent=47 // pred_fallthru
          _
      $region48: #{tpu_custom_call.1} parent=5 // pred_fallthru
        _
    $region6: #{tpu_custom_call.1} parent=1 // loop_footer
      %s18 = sadd.s32 1, %s14
    $region7: #{tpu_custom_call.1} parent=1 // loop_footer_branch
      %13 = sbr.rel target = $region3
    $region8: #{tpu_custom_call.1} parent=1 // loop_exit
      _
    %812 = vsyncpa [#allocation3], 1
    %s813 = scalar_lea.sflag [#allocation3], 1
    %814 = vsyncpa %s813, 1

</llo_original>
